<compile_context>
chip_gen: v7x
topology: tpu7x:2x2x1
jax: 0.10.0
libtpu: 0.0.40
codegen_flags: <defaults>
</compile_context>

<pallas_src>
import functools

import jax
import jax.numpy as jnp
from jax import lax
from jax.experimental import pallas as pl
from jax.experimental.pallas import tpu as pltpu


def _prompt_concat_kernel(label_ref,   # (grid*TB,) int32 in SMEM (scalar prefetch)
                          prefix_ref,  # (Lp, D) VMEM, resident across the grid
                          cls_ref,     # (num_class, Lc, D) VMEM, fully resident
                          suffix_ref,  # (Ls, D) VMEM, resident across the grid
                          out_ref,     # (TB, Lp+Lc+Ls, D) VMEM
                          *, lp, lc, ls, num_class, tb):
    base = pl.program_id(0) * tb

    def body(i, carry):
        # In-kernel gather: label -> row of the VMEM-resident cls_ctx table.
        lab = jnp.clip(label_ref[base + i], 0, num_class - 1)
        out_ref[i, pl.ds(0, lp), :] = prefix_ref[...]
        out_ref[i, pl.ds(lp, lc), :] = cls_ref[lab]
        out_ref[i, pl.ds(lp + lc, ls), :] = suffix_ref[...]
        return carry

    lax.fori_loop(0, tb, body, 0)


def prompt_learner_forward(label, cls_ctx, token_prefix, token_suffix,
                           *, block_b=32):
    """label: (B,) int; cls_ctx: (num_class, Lc, D);
    token_prefix: (1, Lp, D); token_suffix: (1, Ls, D).
    Returns prompts: (B, Lp + Lc + Ls, D)."""
    b = label.shape[0]
    num_class, lc, d = cls_ctx.shape
    lp = token_prefix.shape[1]
    ls = token_suffix.shape[1]
    l_total = lp + lc + ls
    dtype = cls_ctx.dtype
    itemsize = jnp.dtype(dtype).itemsize

    # Resident inputs (double-buffered by the pipeline) + per-step output tile.
    resident_bytes = 2 * (num_class * lc + lp + ls) * d * itemsize

    def step_bytes(t):
        return 2 * t * l_total * d * itemsize

    # Conservative budget so the coarse tile also fits v7x's 64 MiB VMEM.
    budget = 40 * 1024 * 1024
    tb = max(1, min(block_b, b))
    while tb > 1 and resident_bytes + step_bytes(tb) > budget:
        tb //= 2

    grid = pl.cdiv(b, tb)
    padded = grid * tb
    label_i32 = label.astype(jnp.int32)
    if padded != b:
        # Pad labels so in-kernel SMEM reads never go out of bounds on the
        # (partial) last block; padded rows are never written back.
        label_i32 = jnp.pad(label_i32, (0, padded - b))

    vmem_limit = int(min(max(resident_bytes + step_bytes(tb) + (8 << 20),
                             16 << 20),
                         64 << 20))

    kernel = functools.partial(_prompt_concat_kernel, lp=lp, lc=lc, ls=ls,
                               num_class=num_class, tb=tb)

    grid_spec = pltpu.PrefetchScalarGridSpec(
        num_scalar_prefetch=1,
        grid=(grid,),
        in_specs=[
            # Constant block indices -> DMA'd once, kept resident in VMEM.
            pl.BlockSpec((None, lp, d), lambda i, lab: (0, 0, 0)),
            pl.BlockSpec((num_class, lc, d), lambda i, lab: (0, 0, 0)),
            pl.BlockSpec((None, ls, d), lambda i, lab: (0, 0, 0)),
        ],
        out_specs=pl.BlockSpec((tb, l_total, d), lambda i, lab: (i, 0, 0)),
    )

    return pl.pallas_call(
        kernel,
        out_shape=jax.ShapeDtypeStruct((b, l_total, d), dtype),
        grid_spec=grid_spec,
        compiler_params=pltpu.CompilerParams(
            dimension_semantics=("parallel",),
            vmem_limit_bytes=vmem_limit),
    )(label_i32, token_prefix, cls_ctx, token_suffix)


def reference_forward(label, cls_ctx, token_prefix, token_suffix):
    b = label.shape[0]
    gathered = cls_ctx[label]                                   # (B, Lc, D)
    prefix = jnp.broadcast_to(token_prefix, (b,) + token_prefix.shape[1:])
    suffix = jnp.broadcast_to(token_suffix, (b,) + token_suffix.shape[1:])
    return jnp.concatenate([prefix, gathered, suffix], axis=1)


if __name__ == "__main__":
    # Module-implied shapes (kept faithful but small on batch / num_class):
    #   prompt_num (n_ctx = n_cls_ctx) = 4, ctx_dim = 512,
    #   CLIP tokenized length = 77  ->  Lp = n_ctx+1 = 5, Ls = 77 - 5 - 4 = 68
    prompt_num = 4
    ctx_dim = 512
    seq_len = 77
    num_class = 8
    batch = 2
    dtype = jnp.float32

    key = jax.random.PRNGKey(0)
    k_emb, k_cls, k_lab = jax.random.split(key, 3)

    # Deterministic stand-in for token_embedding(clip.tokenize(ctx_init)):
    embedding = jax.random.normal(k_emb, (1, seq_len, ctx_dim), dtype=dtype) * 0.02
    # cls_vectors ~ N(0, 0.02) as in nn.init.normal_(std=0.02)
    cls_ctx = jax.random.normal(k_cls, (num_class, prompt_num, ctx_dim),
                                dtype=dtype) * 0.02

    n_ctx = prompt_num
    n_cls_ctx = prompt_num
    token_prefix = embedding[:, :n_ctx + 1, :]                   # (1, 5, 512)
    token_suffix = embedding[:, n_ctx + 1 + n_cls_ctx:, :]       # (1, 68, 512)

    label = jax.random.randint(k_lab, (batch,), 0, num_class, dtype=jnp.int32)

    prompts = prompt_learner_forward(label, cls_ctx, token_prefix, token_suffix)
    prompts = jax.block_until_ready(prompts)

    ref = reference_forward(label, cls_ctx, token_prefix, token_suffix)
    assert prompts.shape == (batch, seq_len, ctx_dim), prompts.shape
    assert jnp.allclose(prompts, ref), "mismatch vs reference"

    print("KERNEL_OK")
</pallas_src>

<mosaic_0001>
module attributes {stable_mosaic.version = 11 : i64} {
  func.func @_prompt_concat_kernel(%arg0: i32, %arg1: memref<2xi32, #tpu.memory_space<smem>>, %arg2: memref<1x5x512xf32, #tpu.memory_space<vmem>>, %arg3: memref<8x4x512xf32, #tpu.memory_space<vmem>>, %arg4: memref<1x68x512xf32, #tpu.memory_space<vmem>>, %arg5: memref<2x77x512xf32, #tpu.memory_space<vmem>>) attributes {dimension_semantics = [#tpu.dimension_semantics<parallel>], iteration_bounds = array<i64: 1>, scalar_prefetch = 1 : i64, scratch_operands = 0 : i64, tpu.core_type = #tpu.core_type<tc>, window_params = [{pipeline_mode = #tpu.pipeline_mode<synchronous>, transform_indices = @transform_0, window_bounds = array<i64: 1, 5, 512>}, {pipeline_mode = #tpu.pipeline_mode<synchronous>, transform_indices = @transform_1, window_bounds = array<i64: 8, 4, 512>}, {pipeline_mode = #tpu.pipeline_mode<synchronous>, transform_indices = @transform_2, window_bounds = array<i64: 1, 68, 512>}, {transform_indices = @transform_3, window_bounds = array<i64: 2, 77, 512>}]} {
    %c2_i32 = arith.constant 2 : i32
    %0 = arith.muli %arg0, %c2_i32 : i32
    %c0_i32 = arith.constant 0 : i32
    %c2_i32_0 = arith.constant 2 : i32
    %1 = arith.addi %c0_i32, %c2_i32_0 : i32
    %c1_i32 = arith.constant 1 : i32
    scf.for %arg6 = %c0_i32 to %1 step %c1_i32  : i32 {
      %2 = arith.addi %0, %arg6 : i32
      %3 = arith.index_cast %2 : i32 to index
      %4 = memref.load %arg1[%3] : memref<2xi32, #tpu.memory_space<smem>>
      %c0_i32_2 = arith.constant 0 : i32
      %c7_i32 = arith.constant 7 : i32
      %5 = arith.maxsi %c0_i32_2, %4 : i32
      %6 = arith.minsi %c7_i32, %5 : i32
      %c0 = arith.constant 0 : index
      %c0_3 = arith.constant 0 : index
      %c0_4 = arith.constant 0 : index
      %7 = vector.load %arg2[%c0, %c0_3, %c0_4] : memref<1x5x512xf32, #tpu.memory_space<vmem>>, vector<1x5x512xf32>
      %8 = vector.shape_cast %7 : vector<1x5x512xf32> to vector<5x512xf32>
      %9 = arith.index_cast %arg6 : i32 to index
      %c0_5 = arith.constant 0 : index
      %c0_6 = arith.constant 0 : index
      %10 = vector.load %arg5[%9, %c0_5, %c0_6] : memref<2x77x512xf32, #tpu.memory_space<vmem>>, vector<1x5x512xf32>
      %11 = vector.shape_cast %10 : vector<1x5x512xf32> to vector<5x512xf32>
      %12 = vector.shape_cast %8 : vector<5x512xf32> to vector<1x5x512xf32>
      tpu.vector_store %arg5[%9, %c0_5, %c0_6], %12 {strides = array<i32>} : memref<2x77x512xf32, #tpu.memory_space<vmem>>, vector<1x5x512xf32>,
      %13 = arith.index_cast %6 : i32 to index
      %c0_7 = arith.constant 0 : index
      %c0_8 = arith.constant 0 : index
      %14 = vector.load %arg3[%13, %c0_7, %c0_8] : memref<8x4x512xf32, #tpu.memory_space<vmem>>, vector<1x4x512xf32>
      %15 = vector.shape_cast %14 : vector<1x4x512xf32> to vector<4x512xf32>
      %16 = arith.index_cast %arg6 : i32 to index
      %c5 = arith.constant 5 : index
      %c0_9 = arith.constant 0 : index
      %17 = vector.load %arg5[%16, %c5, %c0_9] : memref<2x77x512xf32, #tpu.memory_space<vmem>>, vector<1x4x512xf32>
      %18 = vector.shape_cast %17 : vector<1x4x512xf32> to vector<4x512xf32>
      %19 = vector.shape_cast %15 : vector<4x512xf32> to vector<1x4x512xf32>
      tpu.vector_store %arg5[%16, %c5, %c0_9], %19 {strides = array<i32>} : memref<2x77x512xf32, #tpu.memory_space<vmem>>, vector<1x4x512xf32>,
      %c0_10 = arith.constant 0 : index
      %c0_11 = arith.constant 0 : index
      %c0_12 = arith.constant 0 : index
      %20 = vector.load %arg4[%c0_10, %c0_11, %c0_12] : memref<1x68x512xf32, #tpu.memory_space<vmem>>, vector<1x68x512xf32>
      %21 = vector.shape_cast %20 : vector<1x68x512xf32> to vector<68x512xf32>
      %22 = arith.index_cast %arg6 : i32 to index
      %c9 = arith.constant 9 : index
      %c0_13 = arith.constant 0 : index
      %23 = vector.load %arg5[%22, %c9, %c0_13] : memref<2x77x512xf32, #tpu.memory_space<vmem>>, vector<1x68x512xf32>
      %24 = vector.shape_cast %23 : vector<1x68x512xf32> to vector<68x512xf32>
      %25 = vector.shape_cast %21 : vector<68x512xf32> to vector<1x68x512xf32>
      tpu.vector_store %arg5[%22, %c9, %c0_13], %25 {strides = array<i32>} : memref<2x77x512xf32, #tpu.memory_space<vmem>>, vector<1x68x512xf32>,
    }
    %c2_i32_1 = arith.constant 2 : i32
    return
  }
  func.func @transform_0(%arg0: i32, %arg1: memref<2xi32, #tpu.memory_space<smem>>) -> (i32, i32, i32) {
    %c0_i32 = arith.constant 0 : i32
    %c0_i32_0 = arith.constant 0 : i32
    %c0_i32_1 = arith.constant 0 : i32
    %c0_i32_2 = arith.constant 0 : i32
    return %c0_i32, %c0_i32_0, %c0_i32_1 : i32, i32, i32
  }
  func.func @transform_1(%arg0: i32, %arg1: memref<2xi32, #tpu.memory_space<smem>>) -> (i32, i32, i32) {
    %c0_i32 = arith.constant 0 : i32
    %c0_i32_0 = arith.constant 0 : i32
    %c0_i32_1 = arith.constant 0 : i32
    %c0_i32_2 = arith.constant 0 : i32
    return %c0_i32, %c0_i32_0, %c0_i32_1 : i32, i32, i32
  }
  func.func @transform_2(%arg0: i32, %arg1: memref<2xi32, #tpu.memory_space<smem>>) -> (i32, i32, i32) {
    %c0_i32 = arith.constant 0 : i32
    %c0_i32_0 = arith.constant 0 : i32
    %c0_i32_1 = arith.constant 0 : i32
    %c0_i32_2 = arith.constant 0 : i32
    return %c0_i32, %c0_i32_0, %c0_i32_1 : i32, i32, i32
  }
  func.func @transform_3(%arg0: i32, %arg1: memref<2xi32, #tpu.memory_space<smem>>) -> (i32, i32, i32) {
    %c0_i32 = arith.constant 0 : i32
    %c0_i32_0 = arith.constant 0 : i32
    %c0_i32_1 = arith.constant 0 : i32
    return %arg0, %c0_i32, %c0_i32_0 : i32, i32, i32
  }
}

</mosaic_0001>

<llo_original>
// kernel: tpu_custom_call.1
$region0: #{tpu_custom_call.1}
  #allocation0 [shape = 'u32[]', space=smem, size = 0x4, offset = 0x4, fixed_abs, tag = 'smem constant byte address 0x4 - core index']
  #allocation1 [shape = 'u32[144,128]{1,0:T(1,128)}', space=vmem, size = 0x12000, scoped, tag = 'internal scratch']
  #allocation2 [shape = 's32[1]{0}', space=sflag, size = 0x4, scoped, tag = 'scoped memory for tpu_custom_call.1']
  #allocation3 [shape = 'u8[512]{0}', space=smem, size = 0x200, scoped, tag = 'prefetched SMEM operand 0']
  %s0 = inlined_call_operand.vmem [shape: s32[2], index: 0, kind: input, shape index: {}]
  %s1 = inlined_call_operand.vmem [shape: f32[1,5,512], index: 1, kind: input, shape index: {}]
  %s2 = inlined_call_operand.vmem [shape: f32[8,4,512], index: 2, kind: input, shape index: {}]
  %s3 = inlined_call_operand.vmem [shape: f32[1,68,512], index: 3, kind: input, shape index: {}]
  %s4 = inlined_call_operand.vmem [shape: f32[2,77,512], index: 4, kind: output, shape index: {}]
  %s5 = sld [smem:[#allocation0]]
  $region29: #{tpu_custom_call.1} parent=0
    _
  %s7 = ssub.s32 1, %s5
  %s8 = scalar_select 0, %s7, %s5
  %s9 = sshll.u32 %s0, 4
  %s10 = int_to_ptr.vmem [resolvable:$true] %s9
  %12 = dma.vmem_to_smem %s10, 16, [#allocation3], [#allocation2]
  %13 = dma.done [#allocation2], 16
  %14 = sfence
  // Predicated region
  $region2: #{tpu_custom_call.1} parent=0 // pred_check
    _
  $region3: #{tpu_custom_call.1} parent=0 // pred_check_branch
    %16 = sbr.rel (0) target = $region5
  $region4: #{tpu_custom_call.1} parent=0 // pred_region
    _
  $region5: #{tpu_custom_call.1} parent=0 // pred_fallthru
    _
  // Predicated region
  $region6: #{tpu_custom_call.1} parent=0 // pred_check
    _
  $region7: #{tpu_custom_call.1} parent=0 // pred_check_branch
    %18 = sbr.rel (0) target = $region9
  $region8: #{tpu_custom_call.1} parent=0 // pred_region
    _
  $region9: #{tpu_custom_call.1} parent=0 // pred_fallthru
    _
  // Predicated region
  $region10: #{tpu_custom_call.1} parent=0 // pred_check
    _
  $region11: #{tpu_custom_call.1} parent=0 // pred_check_branch
    %20 = sbr.rel (0) target = $region13
  $region12: #{tpu_custom_call.1} parent=0 // pred_region
    _
  $region13: #{tpu_custom_call.1} parent=0 // pred_fallthru
    _
  %s21 = smul.u32 0, 2
  loop: start=0, step=1, limit=2
  $region14: #{tpu_custom_call.1} parent=0 // loop_pre_header
    _
  $region15: #{tpu_custom_call.1} parent=0 // loop_header
    %s23 = sphi 0, %s27
    %p24 = scmp.ge.s32.totalorder %s23, 2
  $region16: #{tpu_custom_call.1} parent=0 // loop_header_branch
    %26 = sbr.rel (%p24) target = $region20
  $region17: #{tpu_custom_call.1} parent=0 // loop_body
    %s28 = sadd.s32 %s21, %s23
    %s29 = sld [smem:[#allocation3 + %s28]]
    %p30 = scmp.gt.s32.totalorder %s29, 0
    %s31 = scalar_select %p30, %s29, 0
    %p32 = scmp.lt.s32.totalorder %s31, 7
    %s33 = scalar_select %p32, %s31, 7
    %v34 = vld [vmem:[%s1] sm:$0x1f]
    %v35 = vld [vmem:[%s1 + $0x8] sm:$0x1f]
    %v36 = vld [vmem:[%s1 + $0x10] sm:$0x1f]
    %v37 = vld [vmem:[%s1 + $0x18] sm:$0x1f]
    %s38 = smul.u32 %s23, 40
    %s39 = smul.addr %s38, 8
    %s40 = scalar_lea.vmem %s4, %s39
    %41 = vst [vmem:[%s40] sm:$0x1f] %v34
    %42 = vst [vmem:[%s40 + $0x8] sm:$0x1f] %v35
    %43 = vst [vmem:[%s40 + $0x10] sm:$0x1f] %v36
    %44 = vst [vmem:[%s40 + $0x18] sm:$0x1f] %v37
    %s45 = smul.u32 %s33, 4
    %s46 = smul.addr %s45, 4
    %s47 = scalar_lea.vmem %s2, %s46
    %v48 = vld [vmem:[%s47] sm:$0xff]
    %v49 = vld [vmem:[%s47 + $0x8] sm:$0xff]
    %v52 = vcombine.high %v48, %v48
    %v53 = vcombine.high %v49, %v49
    %v54 = vrot.slane %v48, 3
    %v55 = vrot.slane %v52, 3
    %v56 = vrot.slane %v49, 3
    %v57 = vrot.slane %v53, 3
    %62 = vst [vmem:[%s40] sm:$0xe0] %v54
    %63 = vst [vmem:[%s40 + $0x8] sm:$0xe0] %v55
    %64 = vst [vmem:[%s40 + $0x10] sm:$0xe0] %v56
    %65 = vst [vmem:[%s40 + $0x18] sm:$0xe0] %v57
    %66 = vst [vmem:[%s40 + $0x20] sm:$0x1] %v54
    %67 = vst [vmem:[%s40 + $0x28] sm:$0x1] %v55
    %68 = vst [vmem:[%s40 + $0x30] sm:$0x1] %v56
    %69 = vst [vmem:[%s40 + $0x38] sm:$0x1] %v57
    %v70 = vld [vmem:[%s3] sm:$0xff]
    %v71 = vld [vmem:[%s3 + $0x8] sm:$0xff]
    %v72 = vld [vmem:[%s3 + $0x10] sm:$0xff]
    %v73 = vld [vmem:[%s3 + $0x18] sm:$0xff]
    %v74 = vld [vmem:[%s3 + $0x20] sm:$0xff]
    %v75 = vld [vmem:[%s3 + $0x28] sm:$0xff]
    %v76 = vld [vmem:[%s3 + $0x30] sm:$0xff]
    %v77 = vld [vmem:[%s3 + $0x38] sm:$0xff]
    %v78 = vld [vmem:[%s3 + $0x40] sm:$0xff]
    %v79 = vld [vmem:[%s3 + $0x48] sm:$0xff]
    %v80 = vld [vmem:[%s3 + $0x50] sm:$0xff]
    %v81 = vld [vmem:[%s3 + $0x58] sm:$0xff]
    %v82 = vld [vmem:[%s3 + $0x60] sm:$0xff]
    %v83 = vld [vmem:[%s3 + $0x68] sm:$0xff]
    %v84 = vld [vmem:[%s3 + $0x70] sm:$0xff]
    %v85 = vld [vmem:[%s3 + $0x78] sm:$0xff]
    %v86 = vld [vmem:[%s3 + $0x80] sm:$0xff]
    %v87 = vld [vmem:[%s3 + $0x88] sm:$0xff]
    %v88 = vld [vmem:[%s3 + $0x90] sm:$0xff]
    %v89 = vld [vmem:[%s3 + $0x98] sm:$0xff]
    %v90 = vld [vmem:[%s3 + $0xa0] sm:$0xff]
    %v91 = vld [vmem:[%s3 + $0xa8] sm:$0xff]
    %v92 = vld [vmem:[%s3 + $0xb0] sm:$0xff]
    %v93 = vld [vmem:[%s3 + $0xb8] sm:$0xff]
    %v94 = vld [vmem:[%s3 + $0xc0] sm:$0xff]
    %v95 = vld [vmem:[%s3 + $0xc8] sm:$0xff]
    %v96 = vld [vmem:[%s3 + $0xd0] sm:$0xff]
    %v97 = vld [vmem:[%s3 + $0xd8] sm:$0xff]
    %v98 = vld [vmem:[%s3 + $0xe0] sm:$0xff]
    %v99 = vld [vmem:[%s3 + $0xe8] sm:$0xff]
    %v100 = vld [vmem:[%s3 + $0xf0] sm:$0xff]
    %v101 = vld [vmem:[%s3 + $0xf8] sm:$0xff]
    %v102 = vld [vmem:[%s3 + $0x100] sm:$0xf]
    %v103 = vld [vmem:[%s3 + $0x108] sm:$0xf]
    %v104 = vld [vmem:[%s3 + $0x110] sm:$0xf]
    %v105 = vld [vmem:[%s3 + $0x118] sm:$0xf]
    %vm142 = vcmask 1040384
    %v143 = vrot.slane %v70, 7
    %v144 = vrot.slane %v71, 7
    %v145 = vrot.slane %v72, 7
    %v146 = vrot.slane %v73, 7
    %v147 = vrot.slane %v74, 7
    %v148 = vsel %vm142, %v143, %v147
    %v149 = vrot.slane %v75, 7
    %v150 = vsel %vm142, %v144, %v149
    %v151 = vrot.slane %v76, 7
    %v152 = vsel %vm142, %v145, %v151
    %v153 = vrot.slane %v77, 7
    %v154 = vsel %vm142, %v146, %v153
    %v155 = vrot.slane %v78, 7
    %v156 = vsel %vm142, %v147, %v155
    %v157 = vrot.slane %v79, 7
    %v158 = vsel %vm142, %v149, %v157
    %v159 = vrot.slane %v80, 7
    %v160 = vsel %vm142, %v151, %v159
    %v161 = vrot.slane %v81, 7
    %v162 = vsel %vm142, %v153, %v161
    %v163 = vrot.slane %v82, 7
    %v164 = vsel %vm142, %v155, %v163
    %v165 = vrot.slane %v83, 7
    %v166 = vsel %vm142, %v157, %v165
    %v167 = vrot.slane %v84, 7
    %v168 = vsel %vm142, %v159, %v167
    %v169 = vrot.slane %v85, 7
    %v170 = vsel %vm142, %v161, %v169
    %v171 = vrot.slane %v86, 7
    %v172 = vsel %vm142, %v163, %v171
    %v173 = vrot.slane %v87, 7
    %v174 = vsel %vm142, %v165, %v173
    %v175 = vrot.slane %v88, 7
    %v176 = vsel %vm142, %v167, %v175
    %v177 = vrot.slane %v89, 7
    %v178 = vsel %vm142, %v169, %v177
    %v179 = vrot.slane %v90, 7
    %v180 = vsel %vm142, %v171, %v179
    %v181 = vrot.slane %v91, 7
    %v182 = vsel %vm142, %v173, %v181
    %v183 = vrot.slane %v92, 7
    %v184 = vsel %vm142, %v175, %v183
    %v185 = vrot.slane %v93, 7
    %v186 = vsel %vm142, %v177, %v185
    %v187 = vrot.slane %v94, 7
    %v188 = vsel %vm142, %v179, %v187
    %v189 = vrot.slane %v95, 7
    %v190 = vsel %vm142, %v181, %v189
    %v191 = vrot.slane %v96, 7
    %v192 = vsel %vm142, %v183, %v191
    %v193 = vrot.slane %v97, 7
    %v194 = vsel %vm142, %v185, %v193
    %v195 = vrot.slane %v98, 7
    %v196 = vsel %vm142, %v187, %v195
    %v197 = vrot.slane %v99, 7
    %v198 = vsel %vm142, %v189, %v197
    %v199 = vrot.slane %v100, 7
    %v200 = vsel %vm142, %v191, %v199
    %v201 = vrot.slane %v101, 7
    %v202 = vsel %vm142, %v193, %v201
    %v203 = vrot.slane %v102, 7
    %v204 = vsel %vm142, %v195, %v203
    %v205 = vrot.slane %v103, 7
    %v206 = vsel %vm142, %v197, %v205
    %v207 = vrot.slane %v104, 7
    %v208 = vsel %vm142, %v199, %v207
    %v209 = vrot.slane %v105, 7
    %v210 = vsel %vm142, %v201, %v209
    %247 = vst [vmem:[%s40 + $0x20] sm:$0xfe] %v143
    %248 = vst [vmem:[%s40 + $0x28] sm:$0xfe] %v144
    %249 = vst [vmem:[%s40 + $0x30] sm:$0xfe] %v145
    %250 = vst [vmem:[%s40 + $0x38] sm:$0xfe] %v146
    %251 = vst [vmem:[%s40 + $0x40] sm:$0xff] %v148
    %252 = vst [vmem:[%s40 + $0x48] sm:$0xff] %v150
    %253 = vst [vmem:[%s40 + $0x50] sm:$0xff] %v152
    %254 = vst [vmem:[%s40 + $0x58] sm:$0xff] %v154
    %255 = vst [vmem:[%s40 + $0x60] sm:$0xff] %v156
    %256 = vst [vmem:[%s40 + $0x68] sm:$0xff] %v158
    %257 = vst [vmem:[%s40 + $0x70] sm:$0xff] %v160
    %258 = vst [vmem:[%s40 + $0x78] sm:$0xff] %v162
    %259 = vst [vmem:[%s40 + $0x80] sm:$0xff] %v164
    %260 = vst [vmem:[%s40 + $0x88] sm:$0xff] %v166
    %261 = vst [vmem:[%s40 + $0x90] sm:$0xff] %v168
    %262 = vst [vmem:[%s40 + $0x98] sm:$0xff] %v170
    %263 = vst [vmem:[%s40 + $0xa0] sm:$0xff] %v172
    %264 = vst [vmem:[%s40 + $0xa8] sm:$0xff] %v174
    %265 = vst [vmem:[%s40 + $0xb0] sm:$0xff] %v176
    %266 = vst [vmem:[%s40 + $0xb8] sm:$0xff] %v178
    %267 = vst [vmem:[%s40 + $0xc0] sm:$0xff] %v180
    %268 = vst [vmem:[%s40 + $0xc8] sm:$0xff] %v182
    %269 = vst [vmem:[%s40 + $0xd0] sm:$0xff] %v184
    %270 = vst [vmem:[%s40 + $0xd8] sm:$0xff] %v186
    %271 = vst [vmem:[%s40 + $0xe0] sm:$0xff] %v188
    %272 = vst [vmem:[%s40 + $0xe8] sm:$0xff] %v190
    %273 = vst [vmem:[%s40 + $0xf0] sm:$0xff] %v192
    %274 = vst [vmem:[%s40 + $0xf8] sm:$0xff] %v194
    %275 = vst [vmem:[%s40 + $0x100] sm:$0xff] %v196
    %276 = vst [vmem:[%s40 + $0x108] sm:$0xff] %v198
    %277 = vst [vmem:[%s40 + $0x110] sm:$0xff] %v200
    %278 = vst [vmem:[%s40 + $0x118] sm:$0xff] %v202
    %279 = vst [vmem:[%s40 + $0x120] sm:$0x1f] %v204
    %280 = vst [vmem:[%s40 + $0x128] sm:$0x1f] %v206
    %281 = vst [vmem:[%s40 + $0x130] sm:$0x1f] %v208
    %282 = vst [vmem:[%s40 + $0x138] sm:$0x1f] %v210
  $region18: #{tpu_custom_call.1} parent=0 // loop_footer
    %s27 = sadd.s32 1, %s23
  $region19: #{tpu_custom_call.1} parent=0 // loop_footer_branch
    %22 = sbr.rel target = $region15
  $region20: #{tpu_custom_call.1} parent=0 // loop_exit
    _
  // Predicated region
  $region21: #{tpu_custom_call.1} parent=0 // pred_check
    _
  $region22: #{tpu_custom_call.1} parent=0 // pred_check_branch
    %284 = sbr.rel (0) target = $region24
  $region23: #{tpu_custom_call.1} parent=0 // pred_region
    _
  $region24: #{tpu_custom_call.1} parent=0 // pred_fallthru
    _
  // Predicated region
  $region25: #{tpu_custom_call.1} parent=0 // pred_check
    _
  $region26: #{tpu_custom_call.1} parent=0 // pred_check_branch
    %286 = sbr.rel (0) target = $region28
  $region27: #{tpu_custom_call.1} parent=0 // pred_region
    _
  $region28: #{tpu_custom_call.1} parent=0 // pred_fallthru
    _

</llo_original>
